<compile_context>
chip_gen: v7x
topology: tpu7x:2x2x1
jax: 0.10.0
libtpu: 0.0.40
codegen_flags: <defaults>
</compile_context>

<pallas_src>
import jax
import jax.numpy as jnp
from jax.experimental import pallas as pl
from jax.experimental.pallas import tpu as pltpu


def _conv3x3_sigmoid_kernel(xp_ref, w_ref, b_ref, o_ref):
    # xp_ref: (N, C, H+2, W+2) zero-padded activations (VMEM)
    # w_ref : (C*9,) conv weights in SMEM, flat index c*9 + dy*3 + dx (OIHW order)
    # b_ref : (1,)   bias in SMEM
    # o_ref : (N, 1, H, W) output (VMEM)
    N, C, H2, W2 = xp_ref.shape
    H, W = H2 - 2, W2 - 2

    xp = xp_ref[...]                                        # single VMEM load

    # 3x3 conv with one output channel: 9*C scalar-broadcast FMAs on the VPU,
    # accumulating directly into a spatial-major (N, H, W) f32 accumulator.
    # The channel reduction is folded into the loop, so there is no cross-lane
    # reduce and no relayout in the epilogue.
    acc = None
    for c in range(C):
        for dy in range(3):
            for dx in range(3):
                w = w_ref[c * 9 + dy * 3 + dx]              # SMEM scalar read
                tap = xp[:, c, dy:dy + H, dx:dx + W] * w    # (N, H, W)
                acc = tap if acc is None else acc + tap

    y = acc + b_ref[0]                                      # SMEM scalar bias
    o_ref[...] = jax.nn.sigmoid(y).reshape(N, 1, H, W)      # EUP sigmoid, direct store


def default_head_forward(feats_nchw, weight, bias):
    """feats_nchw: list of (N, C_i, H_i, W_i); only feats[0] is used.

    weight: (1, C, 3, 3) (PyTorch OIHW), bias: (1,).  Returns (N, 1, H, W) f32.
    """
    x = feats_nchw[0]
    N, C, H, W = x.shape

    if x.dtype != jnp.float32:
        x = x.astype(jnp.float32)
    # Single fused pad pass over HBM (no transpose, no separate cast).
    xpad = jnp.pad(x, ((0, 0), (0, 0), (1, 1), (1, 1)))
    # OIHW (1, C, 3, 3) -> flat (C*9,) with index c*9 + kh*3 + kw.
    w_flat = weight.reshape(C * 9).astype(jnp.float32)
    b1 = bias.reshape(1).astype(jnp.float32)

    return pl.pallas_call(
        _conv3x3_sigmoid_kernel,
        out_shape=jax.ShapeDtypeStruct((N, 1, H, W), jnp.float32),
        in_specs=[
            pl.BlockSpec(memory_space=pltpu.MemorySpace.VMEM),
            pl.BlockSpec(memory_space=pltpu.MemorySpace.SMEM),
            pl.BlockSpec(memory_space=pltpu.MemorySpace.SMEM),
        ],
        out_specs=pl.BlockSpec(memory_space=pltpu.MemorySpace.VMEM),
    )(xpad, w_flat, b1)


if __name__ == "__main__":
    key = jax.random.PRNGKey(0)
    keys = iter(jax.random.split(key, 16))

    # Default_head(channels) only uses channels[0] / feats[0].
    channels = [4, 8, 16, 16]
    spatial = [16, 8, 8, 4]
    N = 2

    feats = [jax.random.normal(next(keys), (N, c, s, s), jnp.float32)
             for c, s in zip(channels, spatial)]

    C = channels[0]
    weight = 0.3 * jax.random.normal(next(keys), (1, C, 3, 3), jnp.float32)
    bias = 0.1 * jax.random.normal(next(keys), (1,), jnp.float32)

    out = default_head_forward(feats, weight, bias)
    jax.block_until_ready(out)
    assert out.shape == (N, 1, 16, 16), out.shape

    # Plain-JAX reference: Conv2d(C, 1, 3, padding=1) + Sigmoid.
    ref = jax.nn.sigmoid(
        jax.lax.conv_general_dilated(
            feats[0], weight, window_strides=(1, 1),
            padding=((1, 1), (1, 1)),
            dimension_numbers=("NCHW", "OIHW", "NCHW"))
        + bias.reshape(1, 1, 1, 1))
    max_err = float(jnp.max(jnp.abs(out - ref)))
    assert jnp.allclose(out, ref, atol=1e-5, rtol=1e-5), max_err

    print("KERNEL_OK")
</pallas_src>

<mosaic_0001>
module attributes {stable_mosaic.version = 11 : i64} {
  func.func @_conv3x3_sigmoid_kernel(%arg0: memref<2x4x18x18xf32, #tpu.memory_space<vmem>>, %arg1: memref<36xf32, #tpu.memory_space<smem>>, %arg2: memref<1xf32, #tpu.memory_space<smem>>, %arg3: memref<2x1x16x16xf32, #tpu.memory_space<vmem>>) attributes {dimension_semantics = [], scalar_prefetch = 0 : i64, scratch_operands = 0 : i64, tpu.core_type = #tpu.core_type<tc>} {
    %c0 = arith.constant 0 : index
    %c0_0 = arith.constant 0 : index
    %c0_1 = arith.constant 0 : index
    %c0_2 = arith.constant 0 : index
    %0 = vector.load %arg0[%c0, %c0_0, %c0_1, %c0_2] : memref<2x4x18x18xf32, #tpu.memory_space<vmem>>, vector<2x4x18x18xf32>
    %c0_3 = arith.constant 0 : index
    %1 = memref.load %arg1[%c0_3] : memref<36xf32, #tpu.memory_space<smem>>
    %2 = vector.extract_strided_slice %0 {offsets = [0, 0, 0, 0], sizes = [2, 1, 16, 16], strides = [1, 1, 1, 1]} : vector<2x4x18x18xf32> to vector<2x1x16x16xf32>
    %3 = vector.shape_cast %2 : vector<2x1x16x16xf32> to vector<2x16x16xf32>
    %4 = vector.broadcast %1 : f32 to vector<2x16x16xf32>
    %5 = arith.mulf %3, %4 : vector<2x16x16xf32>
    %c1 = arith.constant 1 : index
    %6 = memref.load %arg1[%c1] : memref<36xf32, #tpu.memory_space<smem>>
    %7 = vector.extract_strided_slice %0 {offsets = [0, 0, 0, 1], sizes = [2, 1, 16, 16], strides = [1, 1, 1, 1]} : vector<2x4x18x18xf32> to vector<2x1x16x16xf32>
    %8 = vector.shape_cast %7 : vector<2x1x16x16xf32> to vector<2x16x16xf32>
    %9 = vector.broadcast %6 : f32 to vector<2x16x16xf32>
    %10 = arith.mulf %8, %9 : vector<2x16x16xf32>
    %11 = arith.addf %5, %10 : vector<2x16x16xf32>
    %c2 = arith.constant 2 : index
    %12 = memref.load %arg1[%c2] : memref<36xf32, #tpu.memory_space<smem>>
    %13 = vector.extract_strided_slice %0 {offsets = [0, 0, 0, 2], sizes = [2, 1, 16, 16], strides = [1, 1, 1, 1]} : vector<2x4x18x18xf32> to vector<2x1x16x16xf32>
    %14 = vector.shape_cast %13 : vector<2x1x16x16xf32> to vector<2x16x16xf32>
    %15 = vector.broadcast %12 : f32 to vector<2x16x16xf32>
    %16 = arith.mulf %14, %15 : vector<2x16x16xf32>
    %17 = arith.addf %11, %16 : vector<2x16x16xf32>
    %c3 = arith.constant 3 : index
    %18 = memref.load %arg1[%c3] : memref<36xf32, #tpu.memory_space<smem>>
    %19 = vector.extract_strided_slice %0 {offsets = [0, 0, 1, 0], sizes = [2, 1, 16, 16], strides = [1, 1, 1, 1]} : vector<2x4x18x18xf32> to vector<2x1x16x16xf32>
    %20 = vector.shape_cast %19 : vector<2x1x16x16xf32> to vector<2x16x16xf32>
    %21 = vector.broadcast %18 : f32 to vector<2x16x16xf32>
    %22 = arith.mulf %20, %21 : vector<2x16x16xf32>
    %23 = arith.addf %17, %22 : vector<2x16x16xf32>
    %c4 = arith.constant 4 : index
    %24 = memref.load %arg1[%c4] : memref<36xf32, #tpu.memory_space<smem>>
    %25 = vector.extract_strided_slice %0 {offsets = [0, 0, 1, 1], sizes = [2, 1, 16, 16], strides = [1, 1, 1, 1]} : vector<2x4x18x18xf32> to vector<2x1x16x16xf32>
    %26 = vector.shape_cast %25 : vector<2x1x16x16xf32> to vector<2x16x16xf32>
    %27 = vector.broadcast %24 : f32 to vector<2x16x16xf32>
    %28 = arith.mulf %26, %27 : vector<2x16x16xf32>
    %29 = arith.addf %23, %28 : vector<2x16x16xf32>
    %c5 = arith.constant 5 : index
    %30 = memref.load %arg1[%c5] : memref<36xf32, #tpu.memory_space<smem>>
    %31 = vector.extract_strided_slice %0 {offsets = [0, 0, 1, 2], sizes = [2, 1, 16, 16], strides = [1, 1, 1, 1]} : vector<2x4x18x18xf32> to vector<2x1x16x16xf32>
    %32 = vector.shape_cast %31 : vector<2x1x16x16xf32> to vector<2x16x16xf32>
    %33 = vector.broadcast %30 : f32 to vector<2x16x16xf32>
    %34 = arith.mulf %32, %33 : vector<2x16x16xf32>
    %35 = arith.addf %29, %34 : vector<2x16x16xf32>
    %c6 = arith.constant 6 : index
    %36 = memref.load %arg1[%c6] : memref<36xf32, #tpu.memory_space<smem>>
    %37 = vector.extract_strided_slice %0 {offsets = [0, 0, 2, 0], sizes = [2, 1, 16, 16], strides = [1, 1, 1, 1]} : vector<2x4x18x18xf32> to vector<2x1x16x16xf32>
    %38 = vector.shape_cast %37 : vector<2x1x16x16xf32> to vector<2x16x16xf32>
    %39 = vector.broadcast %36 : f32 to vector<2x16x16xf32>
    %40 = arith.mulf %38, %39 : vector<2x16x16xf32>
    %41 = arith.addf %35, %40 : vector<2x16x16xf32>
    %c7 = arith.constant 7 : index
    %42 = memref.load %arg1[%c7] : memref<36xf32, #tpu.memory_space<smem>>
    %43 = vector.extract_strided_slice %0 {offsets = [0, 0, 2, 1], sizes = [2, 1, 16, 16], strides = [1, 1, 1, 1]} : vector<2x4x18x18xf32> to vector<2x1x16x16xf32>
    %44 = vector.shape_cast %43 : vector<2x1x16x16xf32> to vector<2x16x16xf32>
    %45 = vector.broadcast %42 : f32 to vector<2x16x16xf32>
    %46 = arith.mulf %44, %45 : vector<2x16x16xf32>
    %47 = arith.addf %41, %46 : vector<2x16x16xf32>
    %c8 = arith.constant 8 : index
    %48 = memref.load %arg1[%c8] : memref<36xf32, #tpu.memory_space<smem>>
    %49 = vector.extract_strided_slice %0 {offsets = [0, 0, 2, 2], sizes = [2, 1, 16, 16], strides = [1, 1, 1, 1]} : vector<2x4x18x18xf32> to vector<2x1x16x16xf32>
    %50 = vector.shape_cast %49 : vector<2x1x16x16xf32> to vector<2x16x16xf32>
    %51 = vector.broadcast %48 : f32 to vector<2x16x16xf32>
    %52 = arith.mulf %50, %51 : vector<2x16x16xf32>
    %53 = arith.addf %47, %52 : vector<2x16x16xf32>
    %c9 = arith.constant 9 : index
    %54 = memref.load %arg1[%c9] : memref<36xf32, #tpu.memory_space<smem>>
    %55 = vector.extract_strided_slice %0 {offsets = [0, 1, 0, 0], sizes = [2, 1, 16, 16], strides = [1, 1, 1, 1]} : vector<2x4x18x18xf32> to vector<2x1x16x16xf32>
    %56 = vector.shape_cast %55 : vector<2x1x16x16xf32> to vector<2x16x16xf32>
    %57 = vector.broadcast %54 : f32 to vector<2x16x16xf32>
    %58 = arith.mulf %56, %57 : vector<2x16x16xf32>
    %59 = arith.addf %53, %58 : vector<2x16x16xf32>
    %c10 = arith.constant 10 : index
    %60 = memref.load %arg1[%c10] : memref<36xf32, #tpu.memory_space<smem>>
    %61 = vector.extract_strided_slice %0 {offsets = [0, 1, 0, 1], sizes = [2, 1, 16, 16], strides = [1, 1, 1, 1]} : vector<2x4x18x18xf32> to vector<2x1x16x16xf32>
    %62 = vector.shape_cast %61 : vector<2x1x16x16xf32> to vector<2x16x16xf32>
    %63 = vector.broadcast %60 : f32 to vector<2x16x16xf32>
    %64 = arith.mulf %62, %63 : vector<2x16x16xf32>
    %65 = arith.addf %59, %64 : vector<2x16x16xf32>
    %c11 = arith.constant 11 : index
    %66 = memref.load %arg1[%c11] : memref<36xf32, #tpu.memory_space<smem>>
    %67 = vector.extract_strided_slice %0 {offsets = [0, 1, 0, 2], sizes = [2, 1, 16, 16], strides = [1, 1, 1, 1]} : vector<2x4x18x18xf32> to vector<2x1x16x16xf32>
    %68 = vector.shape_cast %67 : vector<2x1x16x16xf32> to vector<2x16x16xf32>
    %69 = vector.broadcast %66 : f32 to vector<2x16x16xf32>
    %70 = arith.mulf %68, %69 : vector<2x16x16xf32>
    %71 = arith.addf %65, %70 : vector<2x16x16xf32>
    %c12 = arith.constant 12 : index
    %72 = memref.load %arg1[%c12] : memref<36xf32, #tpu.memory_space<smem>>
    %73 = vector.extract_strided_slice %0 {offsets = [0, 1, 1, 0], sizes = [2, 1, 16, 16], strides = [1, 1, 1, 1]} : vector<2x4x18x18xf32> to vector<2x1x16x16xf32>
    %74 = vector.shape_cast %73 : vector<2x1x16x16xf32> to vector<2x16x16xf32>
    %75 = vector.broadcast %72 : f32 to vector<2x16x16xf32>
    %76 = arith.mulf %74, %75 : vector<2x16x16xf32>
    %77 = arith.addf %71, %76 : vector<2x16x16xf32>
    %c13 = arith.constant 13 : index
    %78 = memref.load %arg1[%c13] : memref<36xf32, #tpu.memory_space<smem>>
    %79 = vector.extract_strided_slice %0 {offsets = [0, 1, 1, 1], sizes = [2, 1, 16, 16], strides = [1, 1, 1, 1]} : vector<2x4x18x18xf32> to vector<2x1x16x16xf32>
    %80 = vector.shape_cast %79 : vector<2x1x16x16xf32> to vector<2x16x16xf32>
    %81 = vector.broadcast %78 : f32 to vector<2x16x16xf32>
    %82 = arith.mulf %80, %81 : vector<2x16x16xf32>
    %83 = arith.addf %77, %82 : vector<2x16x16xf32>
    %c14 = arith.constant 14 : index
    %84 = memref.load %arg1[%c14] : memref<36xf32, #tpu.memory_space<smem>>
    %85 = vector.extract_strided_slice %0 {offsets = [0, 1, 1, 2], sizes = [2, 1, 16, 16], strides = [1, 1, 1, 1]} : vector<2x4x18x18xf32> to vector<2x1x16x16xf32>
    %86 = vector.shape_cast %85 : vector<2x1x16x16xf32> to vector<2x16x16xf32>
    %87 = vector.broadcast %84 : f32 to vector<2x16x16xf32>
    %88 = arith.mulf %86, %87 : vector<2x16x16xf32>
    %89 = arith.addf %83, %88 : vector<2x16x16xf32>
    %c15 = arith.constant 15 : index
    %90 = memref.load %arg1[%c15] : memref<36xf32, #tpu.memory_space<smem>>
    %91 = vector.extract_strided_slice %0 {offsets = [0, 1, 2, 0], sizes = [2, 1, 16, 16], strides = [1, 1, 1, 1]} : vector<2x4x18x18xf32> to vector<2x1x16x16xf32>
    %92 = vector.shape_cast %91 : vector<2x1x16x16xf32> to vector<2x16x16xf32>
    %93 = vector.broadcast %90 : f32 to vector<2x16x16xf32>
    %94 = arith.mulf %92, %93 : vector<2x16x16xf32>
    %95 = arith.addf %89, %94 : vector<2x16x16xf32>
    %c16 = arith.constant 16 : index
    %96 = memref.load %arg1[%c16] : memref<36xf32, #tpu.memory_space<smem>>
    %97 = vector.extract_strided_slice %0 {offsets = [0, 1, 2, 1], sizes = [2, 1, 16, 16], strides = [1, 1, 1, 1]} : vector<2x4x18x18xf32> to vector<2x1x16x16xf32>
    %98 = vector.shape_cast %97 : vector<2x1x16x16xf32> to vector<2x16x16xf32>
    %99 = vector.broadcast %96 : f32 to vector<2x16x16xf32>
    %100 = arith.mulf %98, %99 : vector<2x16x16xf32>
    %101 = arith.addf %95, %100 : vector<2x16x16xf32>
    %c17 = arith.constant 17 : index
    %102 = memref.load %arg1[%c17] : memref<36xf32, #tpu.memory_space<smem>>
    %103 = vector.extract_strided_slice %0 {offsets = [0, 1, 2, 2], sizes = [2, 1, 16, 16], strides = [1, 1, 1, 1]} : vector<2x4x18x18xf32> to vector<2x1x16x16xf32>
    %104 = vector.shape_cast %103 : vector<2x1x16x16xf32> to vector<2x16x16xf32>
    %105 = vector.broadcast %102 : f32 to vector<2x16x16xf32>
    %106 = arith.mulf %104, %105 : vector<2x16x16xf32>
    %107 = arith.addf %101, %106 : vector<2x16x16xf32>
    %c18 = arith.constant 18 : index
    %108 = memref.load %arg1[%c18] : memref<36xf32, #tpu.memory_space<smem>>
    %109 = vector.extract_strided_slice %0 {offsets = [0, 2, 0, 0], sizes = [2, 1, 16, 16], strides = [1, 1, 1, 1]} : vector<2x4x18x18xf32> to vector<2x1x16x16xf32>
    %110 = vector.shape_cast %109 : vector<2x1x16x16xf32> to vector<2x16x16xf32>
    %111 = vector.broadcast %108 : f32 to vector<2x16x16xf32>
    %112 = arith.mulf %110, %111 : vector<2x16x16xf32>
    %113 = arith.addf %107, %112 : vector<2x16x16xf32>
    %c19 = arith.constant 19 : index
    %114 = memref.load %arg1[%c19] : memref<36xf32, #tpu.memory_space<smem>>
    %115 = vector.extract_strided_slice %0 {offsets = [0, 2, 0, 1], sizes = [2, 1, 16, 16], strides = [1, 1, 1, 1]} : vector<2x4x18x18xf32> to vector<2x1x16x16xf32>
    %116 = vector.shape_cast %115 : vector<2x1x16x16xf32> to vector<2x16x16xf32>
    %117 = vector.broadcast %114 : f32 to vector<2x16x16xf32>
    %118 = arith.mulf %116, %117 : vector<2x16x16xf32>
    %119 = arith.addf %113, %118 : vector<2x16x16xf32>
    %c20 = arith.constant 20 : index
    %120 = memref.load %arg1[%c20] : memref<36xf32, #tpu.memory_space<smem>>
    %121 = vector.extract_strided_slice %0 {offsets = [0, 2, 0, 2], sizes = [2, 1, 16, 16], strides = [1, 1, 1, 1]} : vector<2x4x18x18xf32> to vector<2x1x16x16xf32>
    %122 = vector.shape_cast %121 : vector<2x1x16x16xf32> to vector<2x16x16xf32>
    %123 = vector.broadcast %120 : f32 to vector<2x16x16xf32>
    %124 = arith.mulf %122, %123 : vector<2x16x16xf32>
    %125 = arith.addf %119, %124 : vector<2x16x16xf32>
    %c21 = arith.constant 21 : index
    %126 = memref.load %arg1[%c21] : memref<36xf32, #tpu.memory_space<smem>>
    %127 = vector.extract_strided_slice %0 {offsets = [0, 2, 1, 0], sizes = [2, 1, 16, 16], strides = [1, 1, 1, 1]} : vector<2x4x18x18xf32> to vector<2x1x16x16xf32>
    %128 = vector.shape_cast %127 : vector<2x1x16x16xf32> to vector<2x16x16xf32>
    %129 = vector.broadcast %126 : f32 to vector<2x16x16xf32>
    %130 = arith.mulf %128, %129 : vector<2x16x16xf32>
    %131 = arith.addf %125, %130 : vector<2x16x16xf32>
    %c22 = arith.constant 22 : index
    %132 = memref.load %arg1[%c22] : memref<36xf32, #tpu.memory_space<smem>>
    %133 = vector.extract_strided_slice %0 {offsets = [0, 2, 1, 1], sizes = [2, 1, 16, 16], strides = [1, 1, 1, 1]} : vector<2x4x18x18xf32> to vector<2x1x16x16xf32>
    %134 = vector.shape_cast %133 : vector<2x1x16x16xf32> to vector<2x16x16xf32>
    %135 = vector.broadcast %132 : f32 to vector<2x16x16xf32>
    %136 = arith.mulf %134, %135 : vector<2x16x16xf32>
    %137 = arith.addf %131, %136 : vector<2x16x16xf32>
    %c23 = arith.constant 23 : index
    %138 = memref.load %arg1[%c23] : memref<36xf32, #tpu.memory_space<smem>>
    %139 = vector.extract_strided_slice %0 {offsets = [0, 2, 1, 2], sizes = [2, 1, 16, 16], strides = [1, 1, 1, 1]} : vector<2x4x18x18xf32> to vector<2x1x16x16xf32>
    %140 = vector.shape_cast %139 : vector<2x1x16x16xf32> to vector<2x16x16xf32>
    %141 = vector.broadcast %138 : f32 to vector<2x16x16xf32>
    %142 = arith.mulf %140, %141 : vector<2x16x16xf32>
    %143 = arith.addf %137, %142 : vector<2x16x16xf32>
    %c24 = arith.constant 24 : index
    %144 = memref.load %arg1[%c24] : memref<36xf32, #tpu.memory_space<smem>>
    %145 = vector.extract_strided_slice %0 {offsets = [0, 2, 2, 0], sizes = [2, 1, 16, 16], strides = [1, 1, 1, 1]} : vector<2x4x18x18xf32> to vector<2x1x16x16xf32>
    %146 = vector.shape_cast %145 : vector<2x1x16x16xf32> to vector<2x16x16xf32>
    %147 = vector.broadcast %144 : f32 to vector<2x16x16xf32>
    %148 = arith.mulf %146, %147 : vector<2x16x16xf32>
    %149 = arith.addf %143, %148 : vector<2x16x16xf32>
    %c25 = arith.constant 25 : index
    %150 = memref.load %arg1[%c25] : memref<36xf32, #tpu.memory_space<smem>>
    %151 = vector.extract_strided_slice %0 {offsets = [0, 2, 2, 1], sizes = [2, 1, 16, 16], strides = [1, 1, 1, 1]} : vector<2x4x18x18xf32> to vector<2x1x16x16xf32>
    %152 = vector.shape_cast %151 : vector<2x1x16x16xf32> to vector<2x16x16xf32>
    %153 = vector.broadcast %150 : f32 to vector<2x16x16xf32>
    %154 = arith.mulf %152, %153 : vector<2x16x16xf32>
    %155 = arith.addf %149, %154 : vector<2x16x16xf32>
    %c26 = arith.constant 26 : index
    %156 = memref.load %arg1[%c26] : memref<36xf32, #tpu.memory_space<smem>>
    %157 = vector.extract_strided_slice %0 {offsets = [0, 2, 2, 2], sizes = [2, 1, 16, 16], strides = [1, 1, 1, 1]} : vector<2x4x18x18xf32> to vector<2x1x16x16xf32>
    %158 = vector.shape_cast %157 : vector<2x1x16x16xf32> to vector<2x16x16xf32>
    %159 = vector.broadcast %156 : f32 to vector<2x16x16xf32>
    %160 = arith.mulf %158, %159 : vector<2x16x16xf32>
    %161 = arith.addf %155, %160 : vector<2x16x16xf32>
    %c27 = arith.constant 27 : index
    %162 = memref.load %arg1[%c27] : memref<36xf32, #tpu.memory_space<smem>>
    %163 = vector.extract_strided_slice %0 {offsets = [0, 3, 0, 0], sizes = [2, 1, 16, 16], strides = [1, 1, 1, 1]} : vector<2x4x18x18xf32> to vector<2x1x16x16xf32>
    %164 = vector.shape_cast %163 : vector<2x1x16x16xf32> to vector<2x16x16xf32>
    %165 = vector.broadcast %162 : f32 to vector<2x16x16xf32>
    %166 = arith.mulf %164, %165 : vector<2x16x16xf32>
    %167 = arith.addf %161, %166 : vector<2x16x16xf32>
    %c28 = arith.constant 28 : index
    %168 = memref.load %arg1[%c28] : memref<36xf32, #tpu.memory_space<smem>>
    %169 = vector.extract_strided_slice %0 {offsets = [0, 3, 0, 1], sizes = [2, 1, 16, 16], strides = [1, 1, 1, 1]} : vector<2x4x18x18xf32> to vector<2x1x16x16xf32>
    %170 = vector.shape_cast %169 : vector<2x1x16x16xf32> to vector<2x16x16xf32>
    %171 = vector.broadcast %168 : f32 to vector<2x16x16xf32>
    %172 = arith.mulf %170, %171 : vector<2x16x16xf32>
    %173 = arith.addf %167, %172 : vector<2x16x16xf32>
    %c29 = arith.constant 29 : index
    %174 = memref.load %arg1[%c29] : memref<36xf32, #tpu.memory_space<smem>>
    %175 = vector.extract_strided_slice %0 {offsets = [0, 3, 0, 2], sizes = [2, 1, 16, 16], strides = [1, 1, 1, 1]} : vector<2x4x18x18xf32> to vector<2x1x16x16xf32>
    %176 = vector.shape_cast %175 : vector<2x1x16x16xf32> to vector<2x16x16xf32>
    %177 = vector.broadcast %174 : f32 to vector<2x16x16xf32>
    %178 = arith.mulf %176, %177 : vector<2x16x16xf32>
    %179 = arith.addf %173, %178 : vector<2x16x16xf32>
    %c30 = arith.constant 30 : index
    %180 = memref.load %arg1[%c30] : memref<36xf32, #tpu.memory_space<smem>>
    %181 = vector.extract_strided_slice %0 {offsets = [0, 3, 1, 0], sizes = [2, 1, 16, 16], strides = [1, 1, 1, 1]} : vector<2x4x18x18xf32> to vector<2x1x16x16xf32>
    %182 = vector.shape_cast %181 : vector<2x1x16x16xf32> to vector<2x16x16xf32>
    %183 = vector.broadcast %180 : f32 to vector<2x16x16xf32>
    %184 = arith.mulf %182, %183 : vector<2x16x16xf32>
    %185 = arith.addf %179, %184 : vector<2x16x16xf32>
    %c31 = arith.constant 31 : index
    %186 = memref.load %arg1[%c31] : memref<36xf32, #tpu.memory_space<smem>>
    %187 = vector.extract_strided_slice %0 {offsets = [0, 3, 1, 1], sizes = [2, 1, 16, 16], strides = [1, 1, 1, 1]} : vector<2x4x18x18xf32> to vector<2x1x16x16xf32>
    %188 = vector.shape_cast %187 : vector<2x1x16x16xf32> to vector<2x16x16xf32>
    %189 = vector.broadcast %186 : f32 to vector<2x16x16xf32>
    %190 = arith.mulf %188, %189 : vector<2x16x16xf32>
    %191 = arith.addf %185, %190 : vector<2x16x16xf32>
    %c32 = arith.constant 32 : index
    %192 = memref.load %arg1[%c32] : memref<36xf32, #tpu.memory_space<smem>>
    %193 = vector.extract_strided_slice %0 {offsets = [0, 3, 1, 2], sizes = [2, 1, 16, 16], strides = [1, 1, 1, 1]} : vector<2x4x18x18xf32> to vector<2x1x16x16xf32>
    %194 = vector.shape_cast %193 : vector<2x1x16x16xf32> to vector<2x16x16xf32>
    %195 = vector.broadcast %192 : f32 to vector<2x16x16xf32>
    %196 = arith.mulf %194, %195 : vector<2x16x16xf32>
    %197 = arith.addf %191, %196 : vector<2x16x16xf32>
    %c33 = arith.constant 33 : index
    %198 = memref.load %arg1[%c33] : memref<36xf32, #tpu.memory_space<smem>>
    %199 = vector.extract_strided_slice %0 {offsets = [0, 3, 2, 0], sizes = [2, 1, 16, 16], strides = [1, 1, 1, 1]} : vector<2x4x18x18xf32> to vector<2x1x16x16xf32>
    %200 = vector.shape_cast %199 : vector<2x1x16x16xf32> to vector<2x16x16xf32>
    %201 = vector.broadcast %198 : f32 to vector<2x16x16xf32>
    %202 = arith.mulf %200, %201 : vector<2x16x16xf32>
    %203 = arith.addf %197, %202 : vector<2x16x16xf32>
    %c34 = arith.constant 34 : index
    %204 = memref.load %arg1[%c34] : memref<36xf32, #tpu.memory_space<smem>>
    %205 = vector.extract_strided_slice %0 {offsets = [0, 3, 2, 1], sizes = [2, 1, 16, 16], strides = [1, 1, 1, 1]} : vector<2x4x18x18xf32> to vector<2x1x16x16xf32>
    %206 = vector.shape_cast %205 : vector<2x1x16x16xf32> to vector<2x16x16xf32>
    %207 = vector.broadcast %204 : f32 to vector<2x16x16xf32>
    %208 = arith.mulf %206, %207 : vector<2x16x16xf32>
    %209 = arith.addf %203, %208 : vector<2x16x16xf32>
    %c35 = arith.constant 35 : index
    %210 = memref.load %arg1[%c35] : memref<36xf32, #tpu.memory_space<smem>>
    %211 = vector.extract_strided_slice %0 {offsets = [0, 3, 2, 2], sizes = [2, 1, 16, 16], strides = [1, 1, 1, 1]} : vector<2x4x18x18xf32> to vector<2x1x16x16xf32>
    %212 = vector.shape_cast %211 : vector<2x1x16x16xf32> to vector<2x16x16xf32>
    %213 = vector.broadcast %210 : f32 to vector<2x16x16xf32>
    %214 = arith.mulf %212, %213 : vector<2x16x16xf32>
    %215 = arith.addf %209, %214 : vector<2x16x16xf32>
    %c0_4 = arith.constant 0 : index
    %216 = memref.load %arg2[%c0_4] : memref<1xf32, #tpu.memory_space<smem>>
    %217 = vector.broadcast %216 : f32 to vector<2x16x16xf32>
    %218 = arith.addf %215, %217 : vector<2x16x16xf32>
    %219 = arith.negf %218 : vector<2x16x16xf32>
    %220 = math.exp %219 : vector<2x16x16xf32>
    %cst = arith.constant 1.000000e+00 : f32
    %221 = vector.broadcast %cst : f32 to vector<2x16x16xf32>
    %222 = arith.addf %221, %220 : vector<2x16x16xf32>
    %223 = arith.divf %221, %222 : vector<2x16x16xf32>
    %224 = vector.shape_cast %223 : vector<2x16x16xf32> to vector<2x1x16x16xf32>
    %c0_5 = arith.constant 0 : index
    %c0_6 = arith.constant 0 : index
    %c0_7 = arith.constant 0 : index
    %c0_8 = arith.constant 0 : index
    %225 = vector.load %arg3[%c0_5, %c0_6, %c0_7, %c0_8] : memref<2x1x16x16xf32, #tpu.memory_space<vmem>>, vector<2x1x16x16xf32>
    tpu.vector_store %arg3[%c0_5, %c0_6, %c0_7, %c0_8], %224 {strides = array<i32>} : memref<2x1x16x16xf32, #tpu.memory_space<vmem>>, vector<2x1x16x16xf32>,
    return
  }
}

</mosaic_0001>

<llo_original>
// kernel: tpu_custom_call.1
$region0: #{tpu_custom_call.1}
  #allocation0 [shape = 'u32[]', space=smem, size = 0x4, offset = 0x4, fixed_abs, tag = 'smem constant byte address 0x4 - core index']
  #allocation1 [shape = 'u32[144,128]{1,0:T(1,128)}', space=vmem, size = 0x12000, scoped, tag = 'internal scratch']
  #allocation2 [shape = 'f32[1]{0:T(128)S(6)}', space=smem, size = 0x200, scoped, tag = 'scoped memory for tpu_custom_call.1']
  %s0 = inlined_call_operand.vmem [shape: f32[2,4,18,18], index: 0, kind: input, shape index: {}]
  %s1 = inlined_call_operand.vmem [shape: f32[36], index: 1, kind: input, shape index: {}]
  %s2 = inlined_call_operand.<no memory space> [shape: f32[1], index: 2, kind: input, shape index: {}]
  %s3 = inlined_call_operand.hbm [shape: f32[2,1,16,16], index: 3, kind: output, shape index: {}]
  %s4 = sld [smem:[#allocation0]]
  $region26: #{tpu_custom_call.1} parent=0
    _
  %s6 = ssub.s32 1, %s4
  %s7 = scalar_select 0, %s6, %s4
  %8 = sst [smem:[#allocation2]] %s2
  $region1: #{tpu_custom_call.1} parent=0
    #allocation3 [shape = 'u8[512]{0}', space=smem, size = 0x200, scoped, tag = 'input window, operand 1, single buffered']
    #allocation4 [shape = 's32[1]{0}', space=sflag, size = 0x4, scoped, tag = 'scoped memory for tpu_custom_call.1']
    #allocation5 [shape = 's32[1]{0}', space=sflag, size = 0x4, scoped, tag = 'scoped memory for tpu_custom_call.1']
    #allocation6 [shape = 'u8[16384]{0}', space=vmem, size = 0x4000, scoped, tag = 'output window, operand 0, single buffered']
    %9 = vsyncpa [#allocation5], 0
    %10 = vsyncpa [#allocation4], 0
    // Predicated region
    $region2: #{tpu_custom_call.1} parent=1 // pred_check
      _
    $region3: #{tpu_custom_call.1} parent=1 // pred_check_branch
      %12 = sbr.rel (0) target = $region5
    $region4: #{tpu_custom_call.1} parent=1 // pred_region
      _
    $region5: #{tpu_custom_call.1} parent=1 // pred_fallthru
      _
    // Predicated region
    $region6: #{tpu_custom_call.1} parent=1 // pred_check
      _
    $region7: #{tpu_custom_call.1} parent=1 // pred_check_branch
      %14 = sbr.rel (0) target = $region9
    $region8: #{tpu_custom_call.1} parent=1 // pred_region
      %s16 = ssub.s32 16, 16
      %17 = vsyncadd [#allocation5], %s16
      %s19 = sshll.u32 %s1, 4
      %s20 = int_to_ptr.vmem [resolvable:$true] %s19
      %22 = dma.vmem_to_smem %s20, 16, [#allocation3], [#allocation5]
    $region9: #{tpu_custom_call.1} parent=1 // pred_fallthru
      _
    // Predicated region
    $region10: #{tpu_custom_call.1} parent=1 // pred_check
      _
    $region11: #{tpu_custom_call.1} parent=1 // pred_check_branch
      %24 = sbr.rel (0) target = $region13
    $region12: #{tpu_custom_call.1} parent=1 // pred_region
      _
    $region13: #{tpu_custom_call.1} parent=1 // pred_fallthru
      _
    // Predicated region
    $region14: #{tpu_custom_call.1} parent=1 // pred_check
      _
    $region15: #{tpu_custom_call.1} parent=1 // pred_check_branch
      %26 = sbr.rel (0) target = $region17
    $region16: #{tpu_custom_call.1} parent=1 // pred_region
      %27 = dma.done [#allocation5], 16
    $region17: #{tpu_custom_call.1} parent=1 // pred_fallthru
      _
    %28 = sfence
    %v29 = vld [vmem:[%s0] sm:$0xff]
    %v30 = vld [vmem:[%s0 + $0x8] sm:$0xff]
    %v31 = vld [vmem:[%s0 + $0x10] sm:$0x3]
    %v32 = vld [vmem:[%s0 + $0x18] sm:$0xff]
    %v33 = vld [vmem:[%s0 + $0x20] sm:$0xff]
    %v34 = vld [vmem:[%s0 + $0x28] sm:$0x3]
    %v35 = vld [vmem:[%s0 + $0x30] sm:$0xff]
    %v36 = vld [vmem:[%s0 + $0x38] sm:$0xff]
    %v37 = vld [vmem:[%s0 + $0x40] sm:$0x3]
    %v38 = vld [vmem:[%s0 + $0x48] sm:$0xff]
    %v39 = vld [vmem:[%s0 + $0x50] sm:$0xff]
    %v40 = vld [vmem:[%s0 + $0x58] sm:$0x3]
    %v41 = vld [vmem:[%s0 + $0x60] sm:$0xff]
    %v42 = vld [vmem:[%s0 + $0x68] sm:$0xff]
    %v43 = vld [vmem:[%s0 + $0x70] sm:$0x3]
    %v44 = vld [vmem:[%s0 + $0x78] sm:$0xff]
    %v45 = vld [vmem:[%s0 + $0x80] sm:$0xff]
    %v46 = vld [vmem:[%s0 + $0x88] sm:$0x3]
    %v47 = vld [vmem:[%s0 + $0x90] sm:$0xff]
    %v48 = vld [vmem:[%s0 + $0x98] sm:$0xff]
    %v49 = vld [vmem:[%s0 + $0xa0] sm:$0x3]
    %v50 = vld [vmem:[%s0 + $0xa8] sm:$0xff]
    %v51 = vld [vmem:[%s0 + $0xb0] sm:$0xff]
    %v52 = vld [vmem:[%s0 + $0xb8] sm:$0x3]
    %s53 = sld [smem:[#allocation3]]
    %v54 = vstv %s53
    %v55 = vmul.f32 %v29, %v54
    %v56 = vmul.f32 %v30, %v54
    %v57 = vmul.f32 %v41, %v54
    %v58 = vmul.f32 %v42, %v54
    %s59 = sld [smem:[#allocation3 + $0x1]]
    %v60 = vstv %s59
    %v61 = vmul.f32 %v29, %v60
    %v62 = vmul.f32 %v30, %v60
    %v63 = vmul.f32 %v41, %v60
    %v64 = vmul.f32 %v42, %v60
    %69 = vrot.lane.b32.xlu0 %v61, 127
    %v70 = vpop.permute.xlu0 %69
    %71 = vrot.lane.b32.xlu0 %v62, 127
    %v72 = vpop.permute.xlu0 %71
    %73 = vrot.lane.b32.xlu0 %v63, 127
    %v74 = vpop.permute.xlu0 %73
    %75 = vrot.lane.b32.xlu0 %v64, 127
    %v76 = vpop.permute.xlu0 %75
    %v81 = vadd.f32 %v55, %v70
    %v82 = vadd.f32 %v56, %v72
    %v83 = vadd.f32 %v57, %v74
    %v84 = vadd.f32 %v58, %v76
    %s85 = sld [smem:[#allocation3 + $0x2]]
    %v86 = vstv %s85
    %v87 = vmul.f32 %v29, %v86
    %v88 = vmul.f32 %v30, %v86
    %v89 = vmul.f32 %v41, %v86
    %v90 = vmul.f32 %v42, %v86
    %95 = vrot.lane.b32.xlu0 %v87, 126
    %v96 = vpop.permute.xlu0 %95
    %97 = vrot.lane.b32.xlu0 %v88, 126
    %v98 = vpop.permute.xlu0 %97
    %99 = vrot.lane.b32.xlu0 %v89, 126
    %v100 = vpop.permute.xlu0 %99
    %101 = vrot.lane.b32.xlu0 %v90, 126
    %v102 = vpop.permute.xlu0 %101
    %v107 = vadd.f32 %v81, %v96
    %v108 = vadd.f32 %v82, %v98
    %v109 = vadd.f32 %v83, %v100
    %v110 = vadd.f32 %v84, %v102
    %s111 = sld [smem:[#allocation3 + $0x3]]
    %v112 = vstv %s111
    %v113 = vmul.f32 %v29, %v112
    %v114 = vmul.f32 %v30, %v112
    %v115 = vmul.f32 %v31, %v112
    %v116 = vmul.f32 %v41, %v112
    %v117 = vmul.f32 %v42, %v112
    %v118 = vmul.f32 %v43, %v112
    %vm125 = vcmask 1046528
    %v126 = vrot.slane %v113, 1
    %v127 = vrot.slane %v114, 1
    %v128 = vsel %vm125, %v126, %v127
    %v129 = vrot.slane %v115, 1
    %v130 = vsel %vm125, %v127, %v129
    %v131 = vrot.slane %v116, 1
    %v132 = vrot.slane %v117, 1
    %v133 = vsel %vm125, %v131, %v132
    %v134 = vrot.slane %v118, 1
    %v135 = vsel %vm125, %v132, %v134
    %v140 = vadd.f32 %v107, %v128
    %v141 = vadd.f32 %v108, %v130
    %v142 = vadd.f32 %v109, %v133
    %v143 = vadd.f32 %v110, %v135
    %s144 = sld [smem:[#allocation3 + $0x4]]
    %v145 = vstv %s144
    %v146 = vmul.f32 %v29, %v145
    %v147 = vmul.f32 %v30, %v145
    %v148 = vmul.f32 %v31, %v145
    %v149 = vmul.f32 %v41, %v145
    %v150 = vmul.f32 %v42, %v145
    %v151 = vmul.f32 %v43, %v145
    %v158 = vrot.slane %v146, 1
    %v159 = vrot.slane %v147, 1
    %v160 = vsel %vm125, %v158, %v159
    %v161 = vrot.slane %v148, 1
    %v162 = vsel %vm125, %v159, %v161
    %v163 = vrot.slane %v149, 1
    %v164 = vrot.slane %v150, 1
    %v165 = vsel %vm125, %v163, %v164
    %v166 = vrot.slane %v151, 1
    %v167 = vsel %vm125, %v164, %v166
    %168 = vrot.lane.b32.xlu0 %v160, 127
    %v169 = vpop.permute.xlu0 %168
    %170 = vrot.lane.b32.xlu0 %v162, 127
    %v171 = vpop.permute.xlu0 %170
    %172 = vrot.lane.b32.xlu0 %v165, 127
    %v173 = vpop.permute.xlu0 %172
    %174 = vrot.lane.b32.xlu0 %v167, 127
    %v175 = vpop.permute.xlu0 %174
    %v180 = vadd.f32 %v140, %v169
    %v181 = vadd.f32 %v141, %v171
    %v182 = vadd.f32 %v142, %v173
    %v183 = vadd.f32 %v143, %v175
    %s184 = sld [smem:[#allocation3 + $0x5]]
    %v185 = vstv %s184
    %v186 = vmul.f32 %v29, %v185
    %v187 = vmul.f32 %v30, %v185
    %v188 = vmul.f32 %v31, %v185
    %v189 = vmul.f32 %v41, %v185
    %v190 = vmul.f32 %v42, %v185
    %v191 = vmul.f32 %v43, %v185
    %v198 = vrot.slane %v186, 1
    %v199 = vrot.slane %v187, 1
    %v200 = vsel %vm125, %v198, %v199
    %v201 = vrot.slane %v188, 1
    %v202 = vsel %vm125, %v199, %v201
    %v203 = vrot.slane %v189, 1
    %v204 = vrot.slane %v190, 1
    %v205 = vsel %vm125, %v203, %v204
    %v206 = vrot.slane %v191, 1
    %v207 = vsel %vm125, %v204, %v206
    %208 = vrot.lane.b32.xlu0 %v200, 126
    %v209 = vpop.permute.xlu0 %208
    %210 = vrot.lane.b32.xlu0 %v202, 126
    %v211 = vpop.permute.xlu0 %210
    %212 = vrot.lane.b32.xlu0 %v205, 126
    %v213 = vpop.permute.xlu0 %212
    %214 = vrot.lane.b32.xlu0 %v207, 126
    %v215 = vpop.permute.xlu0 %214
    %v220 = vadd.f32 %v180, %v209
    %v221 = vadd.f32 %v181, %v211
    %v222 = vadd.f32 %v182, %v213
    %v223 = vadd.f32 %v183, %v215
    %s224 = sld [smem:[#allocation3 + $0x6]]
    %v225 = vstv %s224
    %v226 = vmul.f32 %v29, %v225
    %v227 = vmul.f32 %v30, %v225
    %v228 = vmul.f32 %v31, %v225
    %v229 = vmul.f32 %v41, %v225
    %v230 = vmul.f32 %v42, %v225
    %v231 = vmul.f32 %v43, %v225
    %vm238 = vcmask 1045504
    %v239 = vrot.slane %v226, 2
    %v240 = vrot.slane %v227, 2
    %v241 = vsel %vm238, %v239, %v240
    %v242 = vrot.slane %v228, 2
    %v243 = vsel %vm238, %v240, %v242
    %v244 = vrot.slane %v229, 2
    %v245 = vrot.slane %v230, 2
    %v246 = vsel %vm238, %v244, %v245
    %v247 = vrot.slane %v231, 2
    %v248 = vsel %vm238, %v245, %v247
    %v253 = vadd.f32 %v220, %v241
    %v254 = vadd.f32 %v221, %v243
    %v255 = vadd.f32 %v222, %v246
    %v256 = vadd.f32 %v223, %v248
    %s257 = sld [smem:[#allocation3 + $0x7]]
    %v258 = vstv %s257
    %v259 = vmul.f32 %v29, %v258
    %v260 = vmul.f32 %v30, %v258
    %v261 = vmul.f32 %v31, %v258
    %v262 = vmul.f32 %v41, %v258
    %v263 = vmul.f32 %v42, %v258
    %v264 = vmul.f32 %v43, %v258
    %v271 = vrot.slane %v259, 2
    %v272 = vrot.slane %v260, 2
    %v273 = vsel %vm238, %v271, %v272
    %v274 = vrot.slane %v261, 2
    %v275 = vsel %vm238, %v272, %v274
    %v276 = vrot.slane %v262, 2
    %v277 = vrot.slane %v263, 2
    %v278 = vsel %vm238, %v276, %v277
    %v279 = vrot.slane %v264, 2
    %v280 = vsel %vm238, %v277, %v279
    %281 = vrot.lane.b32.xlu0 %v273, 127
    %v282 = vpop.permute.xlu0 %281
    %283 = vrot.lane.b32.xlu0 %v275, 127
    %v284 = vpop.permute.xlu0 %283
    %285 = vrot.lane.b32.xlu0 %v278, 127
    %v286 = vpop.permute.xlu0 %285
    %287 = vrot.lane.b32.xlu0 %v280, 127
    %v288 = vpop.permute.xlu0 %287
    %v293 = vadd.f32 %v253, %v282
    %v294 = vadd.f32 %v254, %v284
    %v295 = vadd.f32 %v255, %v286
    %v296 = vadd.f32 %v256, %v288
    %s297 = sld [smem:[#allocation3 + $0x8]]
    %v298 = vstv %s297
    %v299 = vmul.f32 %v29, %v298
    %v300 = vmul.f32 %v30, %v298
    %v301 = vmul.f32 %v31, %v298
    %v302 = vmul.f32 %v41, %v298
    %v303 = vmul.f32 %v42, %v298
    %v304 = vmul.f32 %v43, %v298
    %v311 = vrot.slane %v299, 2
    %v312 = vrot.slane %v300, 2
    %v313 = vsel %vm238, %v311, %v312
    %v314 = vrot.slane %v301, 2
    %v315 = vsel %vm238, %v312, %v314
    %v316 = vrot.slane %v302, 2
    %v317 = vrot.slane %v303, 2
    %v318 = vsel %vm238, %v316, %v317
    %v319 = vrot.slane %v304, 2
    %v320 = vsel %vm238, %v317, %v319
    %321 = vrot.lane.b32.xlu0 %v313, 126
    %v322 = vpop.permute.xlu0 %321
    %323 = vrot.lane.b32.xlu0 %v315, 126
    %v324 = vpop.permute.xlu0 %323
    %325 = vrot.lane.b32.xlu0 %v318, 126
    %v326 = vpop.permute.xlu0 %325
    %327 = vrot.lane.b32.xlu0 %v320, 126
    %v328 = vpop.permute.xlu0 %327
    %v333 = vadd.f32 %v293, %v322
    %v334 = vadd.f32 %v294, %v324
    %v335 = vadd.f32 %v295, %v326
    %v336 = vadd.f32 %v296, %v328
    %s337 = sld [smem:[#allocation3 + $0x9]]
    %v338 = vstv %s337
    %v339 = vmul.f32 %v32, %v338
    %v340 = vmul.f32 %v33, %v338
    %v341 = vmul.f32 %v44, %v338
    %v342 = vmul.f32 %v45, %v338
    %v343 = vadd.f32 %v333, %v339
    %v344 = vadd.f32 %v334, %v340
    %v345 = vadd.f32 %v335, %v341
    %v346 = vadd.f32 %v336, %v342
    %s347 = sld [smem:[#allocation3 + $0xa]]
    %v348 = vstv %s347
    %v349 = vmul.f32 %v32, %v348
    %v350 = vmul.f32 %v33, %v348
    %v351 = vmul.f32 %v44, %v348
    %v352 = vmul.f32 %v45, %v348
    %357 = vrot.lane.b32.xlu0 %v349, 127
    %v358 = vpop.permute.xlu0 %357
    %359 = vrot.lane.b32.xlu0 %v350, 127
    %v360 = vpop.permute.xlu0 %359
    %361 = vrot.lane.b32.xlu0 %v351, 127
    %v362 = vpop.permute.xlu0 %361
    %363 = vrot.lane.b32.xlu0 %v352, 127
    %v364 = vpop.permute.xlu0 %363
    %v369 = vadd.f32 %v343, %v358
    %v370 = vadd.f32 %v344, %v360
    %v371 = vadd.f32 %v345, %v362
    %v372 = vadd.f32 %v346, %v364
    %s373 = sld [smem:[#allocation3 + $0xb]]
    %v374 = vstv %s373
    %v375 = vmul.f32 %v32, %v374
    %v376 = vmul.f32 %v33, %v374
    %v377 = vmul.f32 %v44, %v374
    %v378 = vmul.f32 %v45, %v374
    %383 = vrot.lane.b32.xlu0 %v375, 126
    %v384 = vpop.permute.xlu0 %383
    %385 = vrot.lane.b32.xlu0 %v376, 126
    %v386 = vpop.permute.xlu0 %385
    %387 = vrot.lane.b32.xlu0 %v377, 126
    %v388 = vpop.permute.xlu0 %387
    %389 = vrot.lane.b32.xlu0 %v378, 126
    %v390 = vpop.permute.xlu0 %389
    %v395 = vadd.f32 %v369, %v384
    %v396 = vadd.f32 %v370, %v386
    %v397 = vadd.f32 %v371, %v388
    %v398 = vadd.f32 %v372, %v390
    %s399 = sld [smem:[#allocation3 + $0xc]]
    %v400 = vstv %s399
    %v401 = vmul.f32 %v32, %v400
    %v402 = vmul.f32 %v33, %v400
    %v403 = vmul.f32 %v34, %v400
    %v404 = vmul.f32 %v44, %v400
    %v405 = vmul.f32 %v45, %v400
    %v406 = vmul.f32 %v46, %v400
    %v413 = vrot.slane %v401, 1
    %v414 = vrot.slane %v402, 1
    %v415 = vsel %vm125, %v413, %v414
    %v416 = vrot.slane %v403, 1
    %v417 = vsel %vm125, %v414, %v416
    %v418 = vrot.slane %v404, 1
    %v419 = vrot.slane %v405, 1
    %v420 = vsel %vm125, %v418, %v419
    %v421 = vrot.slane %v406, 1
    %v422 = vsel %vm125, %v419, %v421
    %v427 = vadd.f32 %v395, %v415
    %v428 = vadd.f32 %v396, %v417
    %v429 = vadd.f32 %v397, %v420
    %v430 = vadd.f32 %v398, %v422
    %s431 = sld [smem:[#allocation3 + $0xd]]
    %v432 = vstv %s431
    %v433 = vmul.f32 %v32, %v432
    %v434 = vmul.f32 %v33, %v432
    %v435 = vmul.f32 %v34, %v432
    %v436 = vmul.f32 %v44, %v432
    %v437 = vmul.f32 %v45, %v432
    %v438 = vmul.f32 %v46, %v432
    %v445 = vrot.slane %v433, 1
    %v446 = vrot.slane %v434, 1
    %v447 = vsel %vm125, %v445, %v446
    %v448 = vrot.slane %v435, 1
    %v449 = vsel %vm125, %v446, %v448
    %v450 = vrot.slane %v436, 1
    %v451 = vrot.slane %v437, 1
    %v452 = vsel %vm125, %v450, %v451
    %v453 = vrot.slane %v438, 1
    %v454 = vsel %vm125, %v451, %v453
    %455 = vrot.lane.b32.xlu0 %v447, 127
    %v456 = vpop.permute.xlu0 %455
    %457 = vrot.lane.b32.xlu0 %v449, 127
    %v458 = vpop.permute.xlu0 %457
    %459 = vrot.lane.b32.xlu0 %v452, 127
    %v460 = vpop.permute.xlu0 %459
    %461 = vrot.lane.b32.xlu0 %v454, 127
    %v462 = vpop.permute.xlu0 %461
    %v467 = vadd.f32 %v427, %v456
    %v468 = vadd.f32 %v428, %v458
    %v469 = vadd.f32 %v429, %v460
    %v470 = vadd.f32 %v430, %v462
    %s471 = sld [smem:[#allocation3 + $0xe]]
    %v472 = vstv %s471
    %v473 = vmul.f32 %v32, %v472
    %v474 = vmul.f32 %v33, %v472
    %v475 = vmul.f32 %v34, %v472
    %v476 = vmul.f32 %v44, %v472
    %v477 = vmul.f32 %v45, %v472
    %v478 = vmul.f32 %v46, %v472
    %v485 = vrot.slane %v473, 1
    %v486 = vrot.slane %v474, 1
    %v487 = vsel %vm125, %v485, %v486
    %v488 = vrot.slane %v475, 1
    %v489 = vsel %vm125, %v486, %v488
    %v490 = vrot.slane %v476, 1
    %v491 = vrot.slane %v477, 1
    %v492 = vsel %vm125, %v490, %v491
    %v493 = vrot.slane %v478, 1
    %v494 = vsel %vm125, %v491, %v493
    %495 = vrot.lane.b32.xlu0 %v487, 126
    %v496 = vpop.permute.xlu0 %495
    %497 = vrot.lane.b32.xlu0 %v489, 126
    %v498 = vpop.permute.xlu0 %497
    %499 = vrot.lane.b32.xlu0 %v492, 126
    %v500 = vpop.permute.xlu0 %499
    %501 = vrot.lane.b32.xlu0 %v494, 126
    %v502 = vpop.permute.xlu0 %501
    %v507 = vadd.f32 %v467, %v496
    %v508 = vadd.f32 %v468, %v498
    %v509 = vadd.f32 %v469, %v500
    %v510 = vadd.f32 %v470, %v502
    %s511 = sld [smem:[#allocation3 + $0xf]]
    %v512 = vstv %s511
    %v513 = vmul.f32 %v32, %v512
    %v514 = vmul.f32 %v33, %v512
    %v515 = vmul.f32 %v34, %v512
    %v516 = vmul.f32 %v44, %v512
    %v517 = vmul.f32 %v45, %v512
    %v518 = vmul.f32 %v46, %v512
    %v525 = vrot.slane %v513, 2
    %v526 = vrot.slane %v514, 2
    %v527 = vsel %vm238, %v525, %v526
    %v528 = vrot.slane %v515, 2
    %v529 = vsel %vm238, %v526, %v528
    %v530 = vrot.slane %v516, 2
    %v531 = vrot.slane %v517, 2
    %v532 = vsel %vm238, %v530, %v531
    %v533 = vrot.slane %v518, 2
    %v534 = vsel %vm238, %v531, %v533
    %v539 = vadd.f32 %v507, %v527
    %v540 = vadd.f32 %v508, %v529
    %v541 = vadd.f32 %v509, %v532
    %v542 = vadd.f32 %v510, %v534
    %s543 = sld [smem:[#allocation3 + $0x10]]
    %v544 = vstv %s543
    %v545 = vmul.f32 %v32, %v544
    %v546 = vmul.f32 %v33, %v544
    %v547 = vmul.f32 %v34, %v544
    %v548 = vmul.f32 %v44, %v544
    %v549 = vmul.f32 %v45, %v544
    %v550 = vmul.f32 %v46, %v544
    %v557 = vrot.slane %v545, 2
    %v558 = vrot.slane %v546, 2
    %v559 = vsel %vm238, %v557, %v558
    %v560 = vrot.slane %v547, 2
    %v561 = vsel %vm238, %v558, %v560
    %v562 = vrot.slane %v548, 2
    %v563 = vrot.slane %v549, 2
    %v564 = vsel %vm238, %v562, %v563
    %v565 = vrot.slane %v550, 2
    %v566 = vsel %vm238, %v563, %v565
    %567 = vrot.lane.b32.xlu0 %v559, 127
    %v568 = vpop.permute.xlu0 %567
    %569 = vrot.lane.b32.xlu0 %v561, 127
    %v570 = vpop.permute.xlu0 %569
    %571 = vrot.lane.b32.xlu0 %v564, 127
    %v572 = vpop.permute.xlu0 %571
    %573 = vrot.lane.b32.xlu0 %v566, 127
    %v574 = vpop.permute.xlu0 %573
    %v579 = vadd.f32 %v539, %v568
    %v580 = vadd.f32 %v540, %v570
    %v581 = vadd.f32 %v541, %v572
    %v582 = vadd.f32 %v542, %v574
    %s583 = sld [smem:[#allocation3 + $0x11]]
    %v584 = vstv %s583
    %v585 = vmul.f32 %v32, %v584
    %v586 = vmul.f32 %v33, %v584
    %v587 = vmul.f32 %v34, %v584
    %v588 = vmul.f32 %v44, %v584
    %v589 = vmul.f32 %v45, %v584
    %v590 = vmul.f32 %v46, %v584
    %v597 = vrot.slane %v585, 2
    %v598 = vrot.slane %v586, 2
    %v599 = vsel %vm238, %v597, %v598
    %v600 = vrot.slane %v587, 2
    %v601 = vsel %vm238, %v598, %v600
    %v602 = vrot.slane %v588, 2
    %v603 = vrot.slane %v589, 2
    %v604 = vsel %vm238, %v602, %v603
    %v605 = vrot.slane %v590, 2
    %v606 = vsel %vm238, %v603, %v605
    %607 = vrot.lane.b32.xlu0 %v599, 126
    %v608 = vpop.permute.xlu0 %607
    %609 = vrot.lane.b32.xlu0 %v601, 126
    %v610 = vpop.permute.xlu0 %609
    %611 = vrot.lane.b32.xlu0 %v604, 126
    %v612 = vpop.permute.xlu0 %611
    %613 = vrot.lane.b32.xlu0 %v606, 126
    %v614 = vpop.permute.xlu0 %613
    %v619 = vadd.f32 %v579, %v608
    %v620 = vadd.f32 %v580, %v610
    %v621 = vadd.f32 %v581, %v612
    %v622 = vadd.f32 %v582, %v614
    %s623 = sld [smem:[#allocation3 + $0x12]]
    %v624 = vstv %s623
    %v625 = vmul.f32 %v35, %v624
    %v626 = vmul.f32 %v36, %v624
    %v627 = vmul.f32 %v47, %v624
    %v628 = vmul.f32 %v48, %v624
    %v629 = vadd.f32 %v619, %v625
    %v630 = vadd.f32 %v620, %v626
    %v631 = vadd.f32 %v621, %v627
    %v632 = vadd.f32 %v622, %v628
    %s633 = sld [smem:[#allocation3 + $0x13]]
    %v634 = vstv %s633
    %v635 = vmul.f32 %v35, %v634
    %v636 = vmul.f32 %v36, %v634
    %v637 = vmul.f32 %v47, %v634
    %v638 = vmul.f32 %v48, %v634
    %643 = vrot.lane.b32.xlu0 %v635, 127
    %v644 = vpop.permute.xlu0 %643
    %645 = vrot.lane.b32.xlu0 %v636, 127
    %v646 = vpop.permute.xlu0 %645
    %647 = vrot.lane.b32.xlu0 %v637, 127
    %v648 = vpop.permute.xlu0 %647
    %649 = vrot.lane.b32.xlu0 %v638, 127
    %v650 = vpop.permute.xlu0 %649
    %v655 = vadd.f32 %v629, %v644
    %v656 = vadd.f32 %v630, %v646
    %v657 = vadd.f32 %v631, %v648
    %v658 = vadd.f32 %v632, %v650
    %s659 = sld [smem:[#allocation3 + $0x14]]
    %v660 = vstv %s659
    %v661 = vmul.f32 %v35, %v660
    %v662 = vmul.f32 %v36, %v660
    %v663 = vmul.f32 %v47, %v660
    %v664 = vmul.f32 %v48, %v660
    %669 = vrot.lane.b32.xlu0 %v661, 126
    %v670 = vpop.permute.xlu0 %669
    %671 = vrot.lane.b32.xlu0 %v662, 126
    %v672 = vpop.permute.xlu0 %671
    %673 = vrot.lane.b32.xlu0 %v663, 126
    %v674 = vpop.permute.xlu0 %673
    %675 = vrot.lane.b32.xlu0 %v664, 126
    %v676 = vpop.permute.xlu0 %675
    %v681 = vadd.f32 %v655, %v670
    %v682 = vadd.f32 %v656, %v672
    %v683 = vadd.f32 %v657, %v674
    %v684 = vadd.f32 %v658, %v676
    %s685 = sld [smem:[#allocation3 + $0x15]]
    %v686 = vstv %s685
    %v687 = vmul.f32 %v35, %v686
    %v688 = vmul.f32 %v36, %v686
    %v689 = vmul.f32 %v37, %v686
    %v690 = vmul.f32 %v47, %v686
    %v691 = vmul.f32 %v48, %v686
    %v692 = vmul.f32 %v49, %v686
    %v699 = vrot.slane %v687, 1
    %v700 = vrot.slane %v688, 1
    %v701 = vsel %vm125, %v699, %v700
    %v702 = vrot.slane %v689, 1
    %v703 = vsel %vm125, %v700, %v702
    %v704 = vrot.slane %v690, 1
    %v705 = vrot.slane %v691, 1
    %v706 = vsel %vm125, %v704, %v705
    %v707 = vrot.slane %v692, 1
    %v708 = vsel %vm125, %v705, %v707
    %v713 = vadd.f32 %v681, %v701
    %v714 = vadd.f32 %v682, %v703
    %v715 = vadd.f32 %v683, %v706
    %v716 = vadd.f32 %v684, %v708
    %s717 = sld [smem:[#allocation3 + $0x16]]
    %v718 = vstv %s717
    %v719 = vmul.f32 %v35, %v718
    %v720 = vmul.f32 %v36, %v718
    %v721 = vmul.f32 %v37, %v718
    %v722 = vmul.f32 %v47, %v718
    %v723 = vmul.f32 %v48, %v718
    %v724 = vmul.f32 %v49, %v718
    %v731 = vrot.slane %v719, 1
    %v732 = vrot.slane %v720, 1
    %v733 = vsel %vm125, %v731, %v732
    %v734 = vrot.slane %v721, 1
    %v735 = vsel %vm125, %v732, %v734
    %v736 = vrot.slane %v722, 1
    %v737 = vrot.slane %v723, 1
    %v738 = vsel %vm125, %v736, %v737
    %v739 = vrot.slane %v724, 1
    %v740 = vsel %vm125, %v737, %v739
    %741 = vrot.lane.b32.xlu0 %v733, 127
    %v742 = vpop.permute.xlu0 %741
    %743 = vrot.lane.b32.xlu0 %v735, 127
    %v744 = vpop.permute.xlu0 %743
    %745 = vrot.lane.b32.xlu0 %v738, 127
    %v746 = vpop.permute.xlu0 %745
    %747 = vrot.lane.b32.xlu0 %v740, 127
    %v748 = vpop.permute.xlu0 %747
    %v753 = vadd.f32 %v713, %v742
    %v754 = vadd.f32 %v714, %v744
    %v755 = vadd.f32 %v715, %v746
    %v756 = vadd.f32 %v716, %v748
    %s757 = sld [smem:[#allocation3 + $0x17]]
    %v758 = vstv %s757
    %v759 = vmul.f32 %v35, %v758
    %v760 = vmul.f32 %v36, %v758
    %v761 = vmul.f32 %v37, %v758
    %v762 = vmul.f32 %v47, %v758
    %v763 = vmul.f32 %v48, %v758
    %v764 = vmul.f32 %v49, %v758
    %v771 = vrot.slane %v759, 1
    %v772 = vrot.slane %v760, 1
    %v773 = vsel %vm125, %v771, %v772
    %v774 = vrot.slane %v761, 1
    %v775 = vsel %vm125, %v772, %v774
    %v776 = vrot.slane %v762, 1
    %v777 = vrot.slane %v763, 1
    %v778 = vsel %vm125, %v776, %v777
    %v779 = vrot.slane %v764, 1
    %v780 = vsel %vm125, %v777, %v779
    %781 = vrot.lane.b32.xlu0 %v773, 126
    %v782 = vpop.permute.xlu0 %781
    %783 = vrot.lane.b32.xlu0 %v775, 126
    %v784 = vpop.permute.xlu0 %783
    %785 = vrot.lane.b32.xlu0 %v778, 126
    %v786 = vpop.permute.xlu0 %785
    %787 = vrot.lane.b32.xlu0 %v780, 126
    %v788 = vpop.permute.xlu0 %787
    %v793 = vadd.f32 %v753, %v782
    %v794 = vadd.f32 %v754, %v784
    %v795 = vadd.f32 %v755, %v786
    %v796 = vadd.f32 %v756, %v788
    %s797 = sld [smem:[#allocation3 + $0x18]]
    %v798 = vstv %s797
    %v799 = vmul.f32 %v35, %v798
    %v800 = vmul.f32 %v36, %v798
    %v801 = vmul.f32 %v37, %v798
    %v802 = vmul.f32 %v47, %v798
    %v803 = vmul.f32 %v48, %v798
    %v804 = vmul.f32 %v49, %v798
    %v811 = vrot.slane %v799, 2
    %v812 = vrot.slane %v800, 2
    %v813 = vsel %vm238, %v811, %v812
    %v814 = vrot.slane %v801, 2
    %v815 = vsel %vm238, %v812, %v814
    %v816 = vrot.slane %v802, 2
    %v817 = vrot.slane %v803, 2
    %v818 = vsel %vm238, %v816, %v817
    %v819 = vrot.slane %v804, 2
    %v820 = vsel %vm238, %v817, %v819
    %v825 = vadd.f32 %v793, %v813
    %v826 = vadd.f32 %v794, %v815
    %v827 = vadd.f32 %v795, %v818
    %v828 = vadd.f32 %v796, %v820
    %s829 = sld [smem:[#allocation3 + $0x19]]
    %v830 = vstv %s829
    %v831 = vmul.f32 %v35, %v830
    %v832 = vmul.f32 %v36, %v830
    %v833 = vmul.f32 %v37, %v830
    %v834 = vmul.f32 %v47, %v830
    %v835 = vmul.f32 %v48, %v830
    %v836 = vmul.f32 %v49, %v830
    %v843 = vrot.slane %v831, 2
    %v844 = vrot.slane %v832, 2
    %v845 = vsel %vm238, %v843, %v844
    %v846 = vrot.slane %v833, 2
    %v847 = vsel %vm238, %v844, %v846
    %v848 = vrot.slane %v834, 2
    %v849 = vrot.slane %v835, 2
    %v850 = vsel %vm238, %v848, %v849
    %v851 = vrot.slane %v836, 2
    %v852 = vsel %vm238, %v849, %v851
    %853 = vrot.lane.b32.xlu0 %v845, 127
    %v854 = vpop.permute.xlu0 %853
    %855 = vrot.lane.b32.xlu0 %v847, 127
    %v856 = vpop.permute.xlu0 %855
    %857 = vrot.lane.b32.xlu0 %v850, 127
    %v858 = vpop.permute.xlu0 %857
    %859 = vrot.lane.b32.xlu0 %v852, 127
    %v860 = vpop.permute.xlu0 %859
    %v865 = vadd.f32 %v825, %v854
    %v866 = vadd.f32 %v826, %v856
    %v867 = vadd.f32 %v827, %v858
    %v868 = vadd.f32 %v828, %v860
    %s869 = sld [smem:[#allocation3 + $0x1a]]
    %v870 = vstv %s869
    %v871 = vmul.f32 %v35, %v870
    %v872 = vmul.f32 %v36, %v870
    %v873 = vmul.f32 %v37, %v870
    %v874 = vmul.f32 %v47, %v870
    %v875 = vmul.f32 %v48, %v870
    %v876 = vmul.f32 %v49, %v870
    %v883 = vrot.slane %v871, 2
    %v884 = vrot.slane %v872, 2
    %v885 = vsel %vm238, %v883, %v884
    %v886 = vrot.slane %v873, 2
    %v887 = vsel %vm238, %v884, %v886
    %v888 = vrot.slane %v874, 2
    %v889 = vrot.slane %v875, 2
    %v890 = vsel %vm238, %v888, %v889
    %v891 = vrot.slane %v876, 2
    %v892 = vsel %vm238, %v889, %v891
    %893 = vrot.lane.b32.xlu0 %v885, 126
    %v894 = vpop.permute.xlu0 %893
    %895 = vrot.lane.b32.xlu0 %v887, 126
    %v896 = vpop.permute.xlu0 %895
    %897 = vrot.lane.b32.xlu0 %v890, 126
    %v898 = vpop.permute.xlu0 %897
    %899 = vrot.lane.b32.xlu0 %v892, 126
    %v900 = vpop.permute.xlu0 %899
    %v905 = vadd.f32 %v865, %v894
    %v906 = vadd.f32 %v866, %v896
    %v907 = vadd.f32 %v867, %v898
    %v908 = vadd.f32 %v868, %v900
    %s909 = sld [smem:[#allocation3 + $0x1b]]
    %v910 = vstv %s909
    %v911 = vmul.f32 %v38, %v910
    %v912 = vmul.f32 %v39, %v910
    %v913 = vmul.f32 %v50, %v910
    %v914 = vmul.f32 %v51, %v910
    %v915 = vadd.f32 %v905, %v911
    %v916 = vadd.f32 %v906, %v912
    %v917 = vadd.f32 %v907, %v913
    %v918 = vadd.f32 %v908, %v914
    %s919 = sld [smem:[#allocation3 + $0x1c]]
    %v920 = vstv %s919
    %v921 = vmul.f32 %v38, %v920
    %v922 = vmul.f32 %v39, %v920
    %v923 = vmul.f32 %v50, %v920
    %v924 = vmul.f32 %v51, %v920
    %929 = vrot.lane.b32.xlu0 %v921, 127
    %v930 = vpop.permute.xlu0 %929
    %931 = vrot.lane.b32.xlu0 %v922, 127
    %v932 = vpop.permute.xlu0 %931
    %933 = vrot.lane.b32.xlu0 %v923, 127
    %v934 = vpop.permute.xlu0 %933
    %935 = vrot.lane.b32.xlu0 %v924, 127
    %v936 = vpop.permute.xlu0 %935
    %v941 = vadd.f32 %v915, %v930
    %v942 = vadd.f32 %v916, %v932
    %v943 = vadd.f32 %v917, %v934
    %v944 = vadd.f32 %v918, %v936
    %s945 = sld [smem:[#allocation3 + $0x1d]]
    %v946 = vstv %s945
    %v947 = vmul.f32 %v38, %v946
    %v948 = vmul.f32 %v39, %v946
    %v949 = vmul.f32 %v50, %v946
    %v950 = vmul.f32 %v51, %v946
    %955 = vrot.lane.b32.xlu0 %v947, 126
    %v956 = vpop.permute.xlu0 %955
    %957 = vrot.lane.b32.xlu0 %v948, 126
    %v958 = vpop.permute.xlu0 %957
    %959 = vrot.lane.b32.xlu0 %v949, 126
    %v960 = vpop.permute.xlu0 %959
    %961 = vrot.lane.b32.xlu0 %v950, 126
    %v962 = vpop.permute.xlu0 %961
    %v967 = vadd.f32 %v941, %v956
    %v968 = vadd.f32 %v942, %v958
    %v969 = vadd.f32 %v943, %v960
    %v970 = vadd.f32 %v944, %v962
    %s971 = sld [smem:[#allocation3 + $0x1e]]
    %v972 = vstv %s971
    %v973 = vmul.f32 %v38, %v972
    %v974 = vmul.f32 %v39, %v972
    %v975 = vmul.f32 %v40, %v972
    %v976 = vmul.f32 %v50, %v972
    %v977 = vmul.f32 %v51, %v972
    %v978 = vmul.f32 %v52, %v972
    %v985 = vrot.slane %v973, 1
    %v986 = vrot.slane %v974, 1
    %v987 = vsel %vm125, %v985, %v986
    %v988 = vrot.slane %v975, 1
    %v989 = vsel %vm125, %v986, %v988
    %v990 = vrot.slane %v976, 1
    %v991 = vrot.slane %v977, 1
    %v992 = vsel %vm125, %v990, %v991
    %v993 = vrot.slane %v978, 1
    %v994 = vsel %vm125, %v991, %v993
    %v999 = vadd.f32 %v967, %v987
    %v1000 = vadd.f32 %v968, %v989
    %v1001 = vadd.f32 %v969, %v992
    %v1002 = vadd.f32 %v970, %v994
    %s1003 = sld [smem:[#allocation3 + $0x1f]]
    %v1004 = vstv %s1003
    %v1005 = vmul.f32 %v38, %v1004
    %v1006 = vmul.f32 %v39, %v1004
    %v1007 = vmul.f32 %v40, %v1004
    %v1008 = vmul.f32 %v50, %v1004
    %v1009 = vmul.f32 %v51, %v1004
    %v1010 = vmul.f32 %v52, %v1004
    %v1017 = vrot.slane %v1005, 1
    %v1018 = vrot.slane %v1006, 1
    %v1019 = vsel %vm125, %v1017, %v1018
    %v1020 = vrot.slane %v1007, 1
    %v1021 = vsel %vm125, %v1018, %v1020
    %v1022 = vrot.slane %v1008, 1
    %v1023 = vrot.slane %v1009, 1
    %v1024 = vsel %vm125, %v1022, %v1023
    %v1025 = vrot.slane %v1010, 1
    %v1026 = vsel %vm125, %v1023, %v1025
    %1027 = vrot.lane.b32.xlu0 %v1019, 127
    %v1028 = vpop.permute.xlu0 %1027
    %1029 = vrot.lane.b32.xlu0 %v1021, 127
    %v1030 = vpop.permute.xlu0 %1029
    %1031 = vrot.lane.b32.xlu0 %v1024, 127
    %v1032 = vpop.permute.xlu0 %1031
    %1033 = vrot.lane.b32.xlu0 %v1026, 127
    %v1034 = vpop.permute.xlu0 %1033
    %v1039 = vadd.f32 %v999, %v1028
    %v1040 = vadd.f32 %v1000, %v1030
    %v1041 = vadd.f32 %v1001, %v1032
    %v1042 = vadd.f32 %v1002, %v1034
    %s1043 = sld [smem:[#allocation3 + $0x20]]
    %v1044 = vstv %s1043
    %v1045 = vmul.f32 %v38, %v1044
    %v1046 = vmul.f32 %v39, %v1044
    %v1047 = vmul.f32 %v40, %v1044
    %v1048 = vmul.f32 %v50, %v1044
    %v1049 = vmul.f32 %v51, %v1044
    %v1050 = vmul.f32 %v52, %v1044
    %v1057 = vrot.slane %v1045, 1
    %v1058 = vrot.slane %v1046, 1
    %v1059 = vsel %vm125, %v1057, %v1058
    %v1060 = vrot.slane %v1047, 1
    %v1061 = vsel %vm125, %v1058, %v1060
    %v1062 = vrot.slane %v1048, 1
    %v1063 = vrot.slane %v1049, 1
    %v1064 = vsel %vm125, %v1062, %v1063
    %v1065 = vrot.slane %v1050, 1
    %v1066 = vsel %vm125, %v1063, %v1065
    %1067 = vrot.lane.b32.xlu0 %v1059, 126
    %v1068 = vpop.permute.xlu0 %1067
    %1069 = vrot.lane.b32.xlu0 %v1061, 126
    %v1070 = vpop.permute.xlu0 %1069
    %1071 = vrot.lane.b32.xlu0 %v1064, 126
    %v1072 = vpop.permute.xlu0 %1071
    %1073 = vrot.lane.b32.xlu0 %v1066, 126
    %v1074 = vpop.permute.xlu0 %1073
    %v1079 = vadd.f32 %v1039, %v1068
    %v1080 = vadd.f32 %v1040, %v1070
    %v1081 = vadd.f32 %v1041, %v1072
    %v1082 = vadd.f32 %v1042, %v1074
    %s1083 = sld [smem:[#allocation3 + $0x21]]
    %v1084 = vstv %s1083
    %v1085 = vmul.f32 %v38, %v1084
    %v1086 = vmul.f32 %v39, %v1084
    %v1087 = vmul.f32 %v40, %v1084
    %v1088 = vmul.f32 %v50, %v1084
    %v1089 = vmul.f32 %v51, %v1084
    %v1090 = vmul.f32 %v52, %v1084
    %v1097 = vrot.slane %v1085, 2
    %v1098 = vrot.slane %v1086, 2
    %v1099 = vsel %vm238, %v1097, %v1098
    %v1100 = vrot.slane %v1087, 2
    %v1101 = vsel %vm238, %v1098, %v1100
    %v1102 = vrot.slane %v1088, 2
    %v1103 = vrot.slane %v1089, 2
    %v1104 = vsel %vm238, %v1102, %v1103
    %v1105 = vrot.slane %v1090, 2
    %v1106 = vsel %vm238, %v1103, %v1105
    %v1111 = vadd.f32 %v1079, %v1099
    %v1112 = vadd.f32 %v1080, %v1101
    %v1113 = vadd.f32 %v1081, %v1104
    %v1114 = vadd.f32 %v1082, %v1106
    %s1115 = sld [smem:[#allocation3 + $0x22]]
    %v1116 = vstv %s1115
    %v1117 = vmul.f32 %v38, %v1116
    %v1118 = vmul.f32 %v39, %v1116
    %v1119 = vmul.f32 %v40, %v1116
    %v1120 = vmul.f32 %v50, %v1116
    %v1121 = vmul.f32 %v51, %v1116
    %v1122 = vmul.f32 %v52, %v1116
    %v1129 = vrot.slane %v1117, 2
    %v1130 = vrot.slane %v1118, 2
    %v1131 = vsel %vm238, %v1129, %v1130
    %v1132 = vrot.slane %v1119, 2
    %v1133 = vsel %vm238, %v1130, %v1132
    %v1134 = vrot.slane %v1120, 2
    %v1135 = vrot.slane %v1121, 2
    %v1136 = vsel %vm238, %v1134, %v1135
    %v1137 = vrot.slane %v1122, 2
    %v1138 = vsel %vm238, %v1135, %v1137
    %1139 = vrot.lane.b32.xlu0 %v1131, 127
    %v1140 = vpop.permute.xlu0 %1139
    %1141 = vrot.lane.b32.xlu0 %v1133, 127
    %v1142 = vpop.permute.xlu0 %1141
    %1143 = vrot.lane.b32.xlu0 %v1136, 127
    %v1144 = vpop.permute.xlu0 %1143
    %1145 = vrot.lane.b32.xlu0 %v1138, 127
    %v1146 = vpop.permute.xlu0 %1145
    %v1151 = vadd.f32 %v1111, %v1140
    %v1152 = vadd.f32 %v1112, %v1142
    %v1153 = vadd.f32 %v1113, %v1144
    %v1154 = vadd.f32 %v1114, %v1146
    %s1155 = sld [smem:[#allocation3 + $0x23]]
    %v1156 = vstv %s1155
    %v1157 = vmul.f32 %v38, %v1156
    %v1158 = vmul.f32 %v39, %v1156
    %v1159 = vmul.f32 %v40, %v1156
    %v1160 = vmul.f32 %v50, %v1156
    %v1161 = vmul.f32 %v51, %v1156
    %v1162 = vmul.f32 %v52, %v1156
    %v1169 = vrot.slane %v1157, 2
    %v1170 = vrot.slane %v1158, 2
    %v1171 = vsel %vm238, %v1169, %v1170
    %v1172 = vrot.slane %v1159, 2
    %v1173 = vsel %vm238, %v1170, %v1172
    %v1174 = vrot.slane %v1160, 2
    %v1175 = vrot.slane %v1161, 2
    %v1176 = vsel %vm238, %v1174, %v1175
    %v1177 = vrot.slane %v1162, 2
    %v1178 = vsel %vm238, %v1175, %v1177
    %1179 = vrot.lane.b32.xlu0 %v1171, 126
    %v1180 = vpop.permute.xlu0 %1179
    %1181 = vrot.lane.b32.xlu0 %v1173, 126
    %v1182 = vpop.permute.xlu0 %1181
    %1183 = vrot.lane.b32.xlu0 %v1176, 126
    %v1184 = vpop.permute.xlu0 %1183
    %1185 = vrot.lane.b32.xlu0 %v1178, 126
    %v1186 = vpop.permute.xlu0 %1185
    %v1191 = vadd.f32 %v1151, %v1180
    %v1192 = vadd.f32 %v1152, %v1182
    %v1193 = vadd.f32 %v1153, %v1184
    %v1194 = vadd.f32 %v1154, %v1186
    %s1195 = sld [smem:[#allocation2]]
    %v1196 = vstv %s1195
    %v1197 = vadd.f32 %v1191, %v1196
    %v1198 = vadd.f32 %v1192, %v1196
    %v1199 = vadd.f32 %v1193, %v1196
    %v1200 = vadd.f32 %v1194, %v1196
    %v1201 = vxor.u32 %v1197, 2147483648
    %v1202 = vxor.u32 %v1198, 2147483648
    %v1203 = vxor.u32 %v1199, 2147483648
    %v1204 = vxor.u32 %v1200, 2147483648
    %v1205 = vmul.f32 %v1201, 1.442695
    %v1206 = vpow.pop %v1205
    %v1207 = vmul.f32 %v1202, 1.442695
    %v1208 = vpow.pop %v1207
    %v1209 = vmul.f32 %v1203, 1.442695
    %v1210 = vpow.pop %v1209
    %v1211 = vmul.f32 %v1204, 1.442695
    %v1212 = vpow.pop %v1211
    %v1213 = vadd.f32 %v1206, 1.0
    %v1214 = vadd.f32 %v1208, 1.0
    %v1215 = vadd.f32 %v1210, 1.0
    %v1216 = vadd.f32 %v1212, 1.0
    %v1217 = vrcp.pop %v1213
    %v1218 = vmul.f32 1.0, %v1217
    %v1219 = vrcp.pop %v1214
    %v1220 = vmul.f32 1.0, %v1219
    %v1221 = vrcp.pop %v1215
    %v1222 = vmul.f32 1.0, %v1221
    %v1223 = vrcp.pop %v1216
    %v1224 = vmul.f32 1.0, %v1223
    %vm1225 = vcmask 130048
    %1226 = vst.msk [vmem:[#allocation6] sm:$0xff] %vm1225, %v1218
    %1227 = vst.msk [vmem:[#allocation6 + $0x8] sm:$0xff] %vm1225, %v1220
    %1228 = vst.msk [vmem:[#allocation6 + $0x10] sm:$0xff] %vm1225, %v1222
    %1229 = vst.msk [vmem:[#allocation6 + $0x18] sm:$0xff] %vm1225, %v1224
    // Predicated region
    $region18: #{tpu_custom_call.1} parent=1 // pred_check
      _
    $region19: #{tpu_custom_call.1} parent=1 // pred_check_branch
      %1231 = sbr.rel (0) target = $region21
    $region20: #{tpu_custom_call.1} parent=1 // pred_region
      %s1233 = ssub.s32 512, 512
      %1234 = vsyncadd [#allocation4], %s1233
      %s1235 = sshll.u32 [#allocation6], 4
      %s1236 = int_to_ptr.vmem [resolvable:$true] %s1235
      %1241 = dma.vmem_to_hbm [thread:$0]  %s1236, 512, %s3, [#allocation4], 128, 128, 8
    $region21: #{tpu_custom_call.1} parent=1 // pred_fallthru
      _
    // Predicated region
    $region22: #{tpu_custom_call.1} parent=1 // pred_check
      _
    $region23: #{tpu_custom_call.1} parent=1 // pred_check_branch
      %1243 = sbr.rel (0) target = $region25
    $region24: #{tpu_custom_call.1} parent=1 // pred_region
      %1244 = dma.done [#allocation4], 512
    $region25: #{tpu_custom_call.1} parent=1 // pred_fallthru
      _
    %1245 = vsyncpa [#allocation4], 1
    %1246 = vsyncpa [#allocation5], 1

</llo_original>
